<compile_context>
chip_gen: v5e
topology: v5e:2x2
jax: 0.10.0
libtpu: 0.0.40
codegen_flags: <defaults>
</compile_context>

<pallas_src>
import functools

import jax
import jax.numpy as jnp
from jax import lax
from jax.experimental import pallas as pl
from jax.experimental.pallas import tpu as pltpu


_TRANS_B = (((1,), (1,)), ((), ()))   # contract dim 1 of LHS with dim 1 of RHS


def _ffn_kernel(x_ref, w1_ref, wg_ref, w2_ref, o_ref, acc_ref):
    # x_ref : (tm, E)  activation row tile
    # w1_ref: (tf, E)  fc1.weight tile   (PyTorch (out, in) layout)
    # wg_ref: (tf, E)  gate.weight tile
    # w2_ref: (E, tf)  fc2.weight tile
    # o_ref : (tm, E)  output tile (resident across the F axis)
    # acc_ref: (tm, E) f32 accumulator scratch
    k = pl.program_id(1)

    @pl.when(k == 0)
    def _init():
        acc_ref[...] = jnp.zeros_like(acc_ref)

    x = x_ref[...]
    # fc1 / gate: (tm, E) x (tf, E)^T -> (tm, tf), f32 accumulation on the MXU.
    h1 = lax.dot_general(x, w1_ref[...], _TRANS_B,
                         preferred_element_type=jnp.float32)
    hg = lax.dot_general(x, wg_ref[...], _TRANS_B,
                         preferred_element_type=jnp.float32)
    # SiLU(h1) * gate in f32 (sigmoid goes to the EUP slot -> essentially free).
    h = h1 * jax.nn.sigmoid(h1) * hg
    # fc2 partial contribution of this F tile: (tm, tf) x (E, tf)^T -> (tm, E).
    acc_ref[...] += lax.dot_general(h.astype(w2_ref.dtype), w2_ref[...],
                                    _TRANS_B,
                                    preferred_element_type=jnp.float32)

    @pl.when(k == pl.num_programs(1) - 1)
    def _finalize():
        o_ref[...] = acc_ref[...].astype(o_ref.dtype)


def _round_up(n, m):
    return ((n + m - 1) // m) * m


def _pick_f_tile(full, target, align=128):
    """Largest multiple of `align` that divides `full` and is <= target;
    falls back to the full extent (weights fully resident) otherwise."""
    if full <= target:
        return full
    t = (target // align) * align
    while t >= align:
        if full % t == 0:
            return t
        t -= align
    return full


@functools.partial(jax.jit, static_argnames=("tm", "tf"))
def feed_forward_network(x, w1, wg, w2, *, tm=256, tf=512):
    """SwiGLU feed-forward, matching PyTorch FeedForwardNetwork.forward.

    x:  (..., E)
    w1: (F, E)  -- fc1.weight   (PyTorch Linear layout: (out, in), NOT transposed)
    wg: (F, E)  -- gate.weight
    w2: (E, F)  -- fc2.weight

    Defaults target v6e/v7x (tm=256). On v5e prefer tm=128, tf=512.
    Dtype-agnostic: pass bf16 x/weights for bf16 MXU throughput; accumulation
    is always f32.
    """
    x_shape = x.shape
    E = x_shape[-1]
    F = w1.shape[0]
    assert w1.shape == (F, E) and wg.shape == (F, E) and w2.shape == (E, F)

    x2d = x.reshape(-1, E)
    M = x2d.shape[0]

    # Sublane packing: 8 rows for 4-byte dtypes, 16 for 2-byte (bf16/f16).
    row_align = 16 if jnp.dtype(x.dtype).itemsize == 2 else 8
    tm_eff = min(tm, _round_up(M, row_align))
    tm_eff = _round_up(tm_eff, row_align)
    M_pad = _round_up(M, tm_eff)
    if M_pad != M:
        x2d = jnp.pad(x2d, ((0, M_pad - M), (0, 0)))

    tf_eff = _pick_f_tile(F, tf)
    n_m = M_pad // tm_eff
    n_f = F // tf_eff

    # Advisory cost estimate so XLA schedules surrounding ops sensibly.
    w_bytes = int((w1.size + wg.size + w2.size) * jnp.dtype(w1.dtype).itemsize)
    io_bytes = int((x2d.size + M_pad * E) * jnp.dtype(x.dtype).itemsize)
    cost = pl.CostEstimate(
        flops=2 * 3 * M_pad * E * F,
        transcendentals=M_pad * F,
        bytes_accessed=w_bytes + io_bytes,
    )

    out2d = pl.pallas_call(
        _ffn_kernel,
        out_shape=jax.ShapeDtypeStruct((M_pad, E), x.dtype),
        grid_spec=pltpu.PrefetchScalarGridSpec(
            num_scalar_prefetch=0,
            grid=(n_m, n_f),                                     # M outer, F inner
            in_specs=[
                pl.BlockSpec((tm_eff, E), lambda i, k: (i, 0)),  # x rows
                pl.BlockSpec((tf_eff, E), lambda i, k: (k, 0)),  # fc1.weight tile
                pl.BlockSpec((tf_eff, E), lambda i, k: (k, 0)),  # gate.weight tile
                pl.BlockSpec((E, tf_eff), lambda i, k: (0, k)),  # fc2.weight tile
            ],
            out_specs=pl.BlockSpec((tm_eff, E), lambda i, k: (i, 0)),
            scratch_shapes=[pltpu.VMEM((tm_eff, E), jnp.float32)],
        ),
        compiler_params=pltpu.CompilerParams(
            # M axis shards across TensorCores (v7x megacore); F is the reduction.
            dimension_semantics=("parallel", "arbitrary"),
            vmem_limit_bytes=64 * 1024 * 1024,   # fits v7x's 64 MiB physical VMEM
        ),
        cost_estimate=cost,
    )(x2d, w1, wg, w2)

    if M_pad != M:
        out2d = out2d[:M]
    return out2d.reshape(x_shape)


def _reference(x, w1, wg, w2):
    x2d = x.reshape(-1, x.shape[-1]).astype(jnp.float32)
    h1 = x2d @ w1.T.astype(jnp.float32)
    hg = x2d @ wg.T.astype(jnp.float32)
    h = (h1 * jax.nn.sigmoid(h1)) * hg
    out = h @ w2.T.astype(jnp.float32)
    return out.reshape(x.shape)


if __name__ == "__main__":
    key = jax.random.PRNGKey(0)

    # --- Test 1: module-default shapes (YOCOArgs: dim=64, hidden_dim=256) -----
    batch, seq, E, F = 2, 8, 64, 256
    kx, k1, kg, k2, key = jax.random.split(key, 5)
    x = jax.random.normal(kx, (batch, seq, E), dtype=jnp.float32)
    w1 = jax.random.normal(k1, (F, E), dtype=jnp.float32) * (E ** -0.5)
    wg = jax.random.normal(kg, (F, E), dtype=jnp.float32) * (E ** -0.5)
    w2 = jax.random.normal(k2, (E, F), dtype=jnp.float32) * (F ** -0.5)

    out = jax.block_until_ready(feed_forward_network(x, w1, wg, w2))
    ref = _reference(x, w1, wg, w2).astype(x.dtype)
    assert out.shape == x.shape
    assert jnp.allclose(out, ref, atol=1e-4, rtol=1e-4), "f32 mismatch (test 1)"

    # --- Test 2: multi-tile grid (exercises M padding + F-axis accumulator) ---
    batch, seq, E, F = 2, 60, 128, 512      # M = 120 -> padded to 128 rows
    kx, k1, kg, k2, key = jax.random.split(key, 5)
    x = jax.random.normal(kx, (batch, seq, E), dtype=jnp.float32)
    w1 = jax.random.normal(k1, (F, E), dtype=jnp.float32) * (E ** -0.5)
    wg = jax.random.normal(kg, (F, E), dtype=jnp.float32) * (E ** -0.5)
    w2 = jax.random.normal(k2, (E, F), dtype=jnp.float32) * (F ** -0.5)

    out = jax.block_until_ready(
        feed_forward_network(x, w1, wg, w2, tm=64, tf=256))   # grid = (2, 2)
    ref = _reference(x, w1, wg, w2).astype(x.dtype)
    assert out.shape == x.shape
    assert jnp.allclose(out, ref, atol=1e-4, rtol=1e-4), "f32 mismatch (test 2)"

    # --- Test 3: bf16 path (production dtype: bf16 MXU, f32 accumulation) -----
    xb, w1b, wgb, w2b = (a.astype(jnp.bfloat16) for a in (x, w1, wg, w2))
    outb = jax.block_until_ready(
        feed_forward_network(xb, w1b, wgb, w2b, tm=64, tf=256))
    refb = _reference(xb.astype(jnp.float32), w1b.astype(jnp.float32),
                      wgb.astype(jnp.float32), w2b.astype(jnp.float32))
    assert outb.shape == xb.shape
    assert jnp.allclose(outb.astype(jnp.float32), refb,
                        atol=5e-2, rtol=5e-2), "bf16 mismatch (test 3)"

    print("KERNEL_OK")
</pallas_src>

<mosaic_0001>
module attributes {stable_mosaic.version = 11 : i64} {
  func.func @_ffn_kernel(%arg0: i32, %arg1: i32, %arg2: memref<16x64xf32, #tpu.memory_space<vmem>>, %arg3: memref<256x64xf32, #tpu.memory_space<vmem>>, %arg4: memref<256x64xf32, #tpu.memory_space<vmem>>, %arg5: memref<64x256xf32, #tpu.memory_space<vmem>>, %arg6: memref<16x64xf32, #tpu.memory_space<vmem>>, %arg7: memref<16x64xf32, #tpu.memory_space<vmem>>) attributes {dimension_semantics = [#tpu.dimension_semantics<parallel>, #tpu.dimension_semantics<arbitrary>], iteration_bounds = array<i64: 1, 1>, scalar_prefetch = 0 : i64, scratch_operands = 1 : i64, tpu.core_type = #tpu.core_type<tc>, window_params = [{transform_indices = @transform_0, window_bounds = array<i64: 16, 64>}, {transform_indices = @transform_1, window_bounds = array<i64: 256, 64>}, {transform_indices = @transform_2, window_bounds = array<i64: 256, 64>}, {transform_indices = @transform_3, window_bounds = array<i64: 64, 256>}, {transform_indices = @transform_4, window_bounds = array<i64: 16, 64>}]} {
    %c0_i32 = arith.constant 0 : i32
    %0 = arith.cmpi eq, %arg1, %c0_i32 : i32
    %1 = arith.extui %0 : i1 to i32
    %c0_i32_0 = arith.constant 0 : i32
    %2 = arith.cmpi ne, %1, %c0_i32_0 : i32
    scf.if %2 {
      %cst_17 = arith.constant 0.000000e+00 : f32
      %23 = vector.broadcast %cst_17 : f32 to vector<16x64xf32>
      %c0_18 = arith.constant 0 : index
      %c0_19 = arith.constant 0 : index
      %24 = vector.load %arg7[%c0_18, %c0_19] : memref<16x64xf32, #tpu.memory_space<vmem>>, vector<16x64xf32>
      tpu.vector_store %arg7[%c0_18, %c0_19], %23 {strides = array<i32>} : memref<16x64xf32, #tpu.memory_space<vmem>>, vector<16x64xf32>,
    } else {
    }
    %c0 = arith.constant 0 : index
    %c0_1 = arith.constant 0 : index
    %3 = vector.load %arg2[%c0, %c0_1] : memref<16x64xf32, #tpu.memory_space<vmem>>, vector<16x64xf32>
    %c0_2 = arith.constant 0 : index
    %c0_3 = arith.constant 0 : index
    %4 = vector.load %arg3[%c0_2, %c0_3] : memref<256x64xf32, #tpu.memory_space<vmem>>, vector<256x64xf32>
    %cst = arith.constant dense<0.000000e+00> : vector<16x256xf32>
    %5 = tpu.matmul %3, %4, %cst {dimension_numbers = #tpu.dot_dimension_numbers<[1], [1], [0], [0], [0, 0, 1, 0], [], []>} : vector<16x64xf32>, vector<256x64xf32>, vector<16x256xf32> -> vector<16x256xf32>
    %c0_4 = arith.constant 0 : index
    %c0_5 = arith.constant 0 : index
    %6 = vector.load %arg4[%c0_4, %c0_5] : memref<256x64xf32, #tpu.memory_space<vmem>>, vector<256x64xf32>
    %cst_6 = arith.constant dense<0.000000e+00> : vector<16x256xf32>
    %7 = tpu.matmul %3, %6, %cst_6 {dimension_numbers = #tpu.dot_dimension_numbers<[1], [1], [0], [0], [0, 0, 1, 0], [], []>} : vector<16x64xf32>, vector<256x64xf32>, vector<16x256xf32> -> vector<16x256xf32>
    %8 = arith.negf %5 : vector<16x256xf32>
    %9 = math.exp %8 : vector<16x256xf32>
    %cst_7 = arith.constant 1.000000e+00 : f32
    %10 = vector.broadcast %cst_7 : f32 to vector<16x256xf32>
    %11 = arith.addf %10, %9 : vector<16x256xf32>
    %12 = arith.divf %10, %11 : vector<16x256xf32>
    %13 = arith.mulf %5, %12 : vector<16x256xf32>
    %14 = arith.mulf %13, %7 : vector<16x256xf32>
    %c0_8 = arith.constant 0 : index
    %c0_9 = arith.constant 0 : index
    %15 = vector.load %arg7[%c0_8, %c0_9] : memref<16x64xf32, #tpu.memory_space<vmem>>, vector<16x64xf32>
    %c0_10 = arith.constant 0 : index
    %c0_11 = arith.constant 0 : index
    %16 = vector.load %arg5[%c0_10, %c0_11] : memref<64x256xf32, #tpu.memory_space<vmem>>, vector<64x256xf32>
    %cst_12 = arith.constant dense<0.000000e+00> : vector<16x64xf32>
    %17 = tpu.matmul %14, %16, %cst_12 {dimension_numbers = #tpu.dot_dimension_numbers<[1], [1], [0], [0], [0, 0, 1, 0], [], []>} : vector<16x256xf32>, vector<64x256xf32>, vector<16x64xf32> -> vector<16x64xf32>
    %18 = arith.addf %15, %17 : vector<16x64xf32>
    %c0_13 = arith.constant 0 : index
    %c0_14 = arith.constant 0 : index
    %19 = vector.load %arg7[%c0_13, %c0_14] : memref<16x64xf32, #tpu.memory_space<vmem>>, vector<16x64xf32>
    tpu.vector_store %arg7[%c0_13, %c0_14], %18 {strides = array<i32>} : memref<16x64xf32, #tpu.memory_space<vmem>>, vector<16x64xf32>,
    %c0_i32_15 = arith.constant 0 : i32
    %20 = arith.cmpi eq, %arg1, %c0_i32_15 : i32
    %21 = arith.extui %20 : i1 to i32
    %c0_i32_16 = arith.constant 0 : i32
    %22 = arith.cmpi ne, %21, %c0_i32_16 : i32
    scf.if %22 {
      %c0_17 = arith.constant 0 : index
      %c0_18 = arith.constant 0 : index
      %23 = vector.load %arg7[%c0_17, %c0_18] : memref<16x64xf32, #tpu.memory_space<vmem>>, vector<16x64xf32>
      %c0_19 = arith.constant 0 : index
      %c0_20 = arith.constant 0 : index
      %24 = vector.load %arg6[%c0_19, %c0_20] : memref<16x64xf32, #tpu.memory_space<vmem>>, vector<16x64xf32>
      tpu.vector_store %arg6[%c0_19, %c0_20], %23 {strides = array<i32>} : memref<16x64xf32, #tpu.memory_space<vmem>>, vector<16x64xf32>,
    } else {
    }
    return
  }
  func.func @transform_0(%arg0: i32, %arg1: i32) -> (i32, i32) {
    %c0_i32 = arith.constant 0 : i32
    %c0_i32_0 = arith.constant 0 : i32
    return %arg0, %c0_i32 : i32, i32
  }
  func.func @transform_1(%arg0: i32, %arg1: i32) -> (i32, i32) {
    %c0_i32 = arith.constant 0 : i32
    %c0_i32_0 = arith.constant 0 : i32
    return %arg1, %c0_i32 : i32, i32
  }
  func.func @transform_2(%arg0: i32, %arg1: i32) -> (i32, i32) {
    %c0_i32 = arith.constant 0 : i32
    %c0_i32_0 = arith.constant 0 : i32
    return %arg1, %c0_i32 : i32, i32
  }
  func.func @transform_3(%arg0: i32, %arg1: i32) -> (i32, i32) {
    %c0_i32 = arith.constant 0 : i32
    %c0_i32_0 = arith.constant 0 : i32
    return %c0_i32, %arg1 : i32, i32
  }
  func.func @transform_4(%arg0: i32, %arg1: i32) -> (i32, i32) {
    %c0_i32 = arith.constant 0 : i32
    %c0_i32_0 = arith.constant 0 : i32
    return %arg0, %c0_i32 : i32, i32
  }
}

</mosaic_0001>

<llo_original>
// kernel: feed_forward_network.1
$region0: #{feed_forward_network.1}
  #allocation0 [shape = 'u32[]', space=smem, size = 0x4, offset = 0x4, fixed_abs, tag = 'smem constant byte address 0x4 - core index']
  #allocation1 [shape = 'u32[72,128]{1,0:T(1,128)}', space=vmem, size = 0x9000, scoped, tag = 'internal scratch']
  #allocation2 [shape = 'f32[16,64]{1,0:T(8,128)}', space=vmem, size = 0x2000, scoped, tag = 'scratch operand']
  %s0 = inlined_call_operand.vmem [shape: f32[16,64], index: 0, kind: input, shape index: {}]
  %s1 = inlined_call_operand.vmem [shape: f32[256,64], index: 1, kind: input, shape index: {}]
  %s2 = inlined_call_operand.vmem [shape: f32[256,64], index: 2, kind: input, shape index: {}]
  %s3 = inlined_call_operand.vmem [shape: f32[64,256], index: 3, kind: input, shape index: {}]
  %s4 = inlined_call_operand.hbm [shape: f32[16,64], index: 4, kind: output, shape index: {}]
  %s5 = sld [smem:[#allocation0]]
  $region34: #{feed_forward_network.1} parent=0
    _
  %s7 = ssub.s32 1, %s5
  %s8 = scalar_select 0, %s7, %s5
  $region1: #{feed_forward_network.1} parent=0
    #allocation3 [shape = 'u8[8192]{0}', space=vmem, size = 0x2000, scoped, tag = 'output window, operand 0, single buffered']
    #allocation4 [shape = 's32[1]{0}', space=sflag, size = 0x4, scoped, tag = 'scoped memory for feed_forward_network.1']
    %9 = vsyncpa [#allocation4], 0
    // Predicated region
    $region2: #{feed_forward_network.1} parent=1 // pred_check
      _
    $region3: #{feed_forward_network.1} parent=1 // pred_check_branch
      %11 = sbr.rel (0) target = $region5
    $region4: #{feed_forward_network.1} parent=1 // pred_region
      _
    $region5: #{feed_forward_network.1} parent=1 // pred_fallthru
      _
    // Predicated region
    $region6: #{feed_forward_network.1} parent=1 // pred_check
      _
    $region7: #{feed_forward_network.1} parent=1 // pred_check_branch
      %13 = sbr.rel (0) target = $region9
    $region8: #{feed_forward_network.1} parent=1 // pred_region
      _
    $region9: #{feed_forward_network.1} parent=1 // pred_fallthru
      _
    // Predicated region
    $region10: #{feed_forward_network.1} parent=1 // pred_check
      _
    $region11: #{feed_forward_network.1} parent=1 // pred_check_branch
      %15 = sbr.rel (0) target = $region13
    $region12: #{feed_forward_network.1} parent=1 // pred_region
      _
    $region13: #{feed_forward_network.1} parent=1 // pred_fallthru
      _
    // Predicated region
    $region14: #{feed_forward_network.1} parent=1 // pred_check
      _
    $region15: #{feed_forward_network.1} parent=1 // pred_check_branch
      %17 = sbr.rel (0) target = $region17
    $region16: #{feed_forward_network.1} parent=1 // pred_region
      _
    $region17: #{feed_forward_network.1} parent=1 // pred_fallthru
      _
    %p18 = scmp.eq.s32.totalorder 0, 0
    // Predicated region
    $region18: #{feed_forward_network.1} parent=1 // pred_check
      %p19 = pneg %p18
    $region19: #{feed_forward_network.1} parent=1 // pred_check_branch
      %21 = sbr.rel (%p19) target = $region21
    $region20: #{feed_forward_network.1} parent=1 // pred_region
      %vm22 = vcmask 523264
      %23 = vst.msk [vmem:[#allocation2] sm:$0xff] %vm22, 0.0
      %24 = vst.msk [vmem:[#allocation2 + $0x8] sm:$0xff] %vm22, 0.0
    $region21: #{feed_forward_network.1} parent=1 // pred_fallthru
      _
    %v25 = vld [vmem:[%s0] sm:$0xff]
    %v26 = vld [vmem:[%s0 + $0x8] sm:$0xff]
    %v27 = vld [vmem:[%s1] sm:$0xff]
    %v28 = vld [vmem:[%s1 + $0x8] sm:$0xff]
    %v29 = vld [vmem:[%s1 + $0x10] sm:$0xff]
    %v30 = vld [vmem:[%s1 + $0x18] sm:$0xff]
    %v31 = vld [vmem:[%s1 + $0x20] sm:$0xff]
    %v32 = vld [vmem:[%s1 + $0x28] sm:$0xff]
    %v33 = vld [vmem:[%s1 + $0x30] sm:$0xff]
    %v34 = vld [vmem:[%s1 + $0x38] sm:$0xff]
    %v35 = vld [vmem:[%s1 + $0x40] sm:$0xff]
    %v36 = vld [vmem:[%s1 + $0x48] sm:$0xff]
    %v37 = vld [vmem:[%s1 + $0x50] sm:$0xff]
    %v38 = vld [vmem:[%s1 + $0x58] sm:$0xff]
    %v39 = vld [vmem:[%s1 + $0x60] sm:$0xff]
    %v40 = vld [vmem:[%s1 + $0x68] sm:$0xff]
    %v41 = vld [vmem:[%s1 + $0x70] sm:$0xff]
    %v42 = vld [vmem:[%s1 + $0x78] sm:$0xff]
    %v43 = vld [vmem:[%s1 + $0x80] sm:$0xff]
    %v44 = vld [vmem:[%s1 + $0x88] sm:$0xff]
    %v45 = vld [vmem:[%s1 + $0x90] sm:$0xff]
    %v46 = vld [vmem:[%s1 + $0x98] sm:$0xff]
    %v47 = vld [vmem:[%s1 + $0xa0] sm:$0xff]
    %v48 = vld [vmem:[%s1 + $0xa8] sm:$0xff]
    %v49 = vld [vmem:[%s1 + $0xb0] sm:$0xff]
    %v50 = vld [vmem:[%s1 + $0xb8] sm:$0xff]
    %v51 = vld [vmem:[%s1 + $0xc0] sm:$0xff]
    %v52 = vld [vmem:[%s1 + $0xc8] sm:$0xff]
    %v53 = vld [vmem:[%s1 + $0xd0] sm:$0xff]
    %v54 = vld [vmem:[%s1 + $0xd8] sm:$0xff]
    %v55 = vld [vmem:[%s1 + $0xe0] sm:$0xff]
    %v56 = vld [vmem:[%s1 + $0xe8] sm:$0xff]
    %v57 = vld [vmem:[%s1 + $0xf0] sm:$0xff]
    %v58 = vld [vmem:[%s1 + $0xf8] sm:$0xff]
    %vm59 = vcmask 523264
    %v61 = vsel %vm59, %v25, 0
    %v64 = vsel %vm59, %v26, 0
    %v67 = vsel %vm59, %v27, 0
    %v70 = vsel %vm59, %v28, 0
    %v73 = vsel %vm59, %v29, 0
    %v76 = vsel %vm59, %v30, 0
    %v79 = vsel %vm59, %v31, 0
    %v82 = vsel %vm59, %v32, 0
    %v85 = vsel %vm59, %v33, 0
    %v88 = vsel %vm59, %v34, 0
    %v91 = vsel %vm59, %v35, 0
    %v94 = vsel %vm59, %v36, 0
    %v97 = vsel %vm59, %v37, 0
    %v100 = vsel %vm59, %v38, 0
    %v103 = vsel %vm59, %v39, 0
    %v106 = vsel %vm59, %v40, 0
    %v109 = vsel %vm59, %v41, 0
    %v112 = vsel %vm59, %v42, 0
    %v115 = vsel %vm59, %v43, 0
    %v118 = vsel %vm59, %v44, 0
    %v121 = vsel %vm59, %v45, 0
    %v124 = vsel %vm59, %v46, 0
    %v127 = vsel %vm59, %v47, 0
    %v130 = vsel %vm59, %v48, 0
    %v133 = vsel %vm59, %v49, 0
    %v136 = vsel %vm59, %v50, 0
    %v139 = vsel %vm59, %v51, 0
    %v142 = vsel %vm59, %v52, 0
    %v145 = vsel %vm59, %v53, 0
    %v148 = vsel %vm59, %v54, 0
    %v151 = vsel %vm59, %v55, 0
    %v154 = vsel %vm59, %v56, 0
    %v157 = vsel %vm59, %v57, 0
    %v160 = vsel %vm59, %v58, 0
    %162 = vmatpush.xpose.msra.mxu0 %v112
    %163 = vmatpush.xpose.msra.mxu0 %v109
    %164 = vmatpush.xpose.msra.mxu0 %v106
    %165 = vmatpush.xpose.msra.mxu0 %v103
    %166 = vmatpush.xpose.msra.mxu0 %v100
    %167 = vmatpush.xpose.msra.mxu0 %v97
    %168 = vmatpush.xpose.msra.mxu0 %v94
    %169 = vmatpush.xpose.msra.mxu0 %v91
    %170 = vmatpush.xpose.msra.mxu0 %v88
    %171 = vmatpush.xpose.msra.mxu0 %v85
    %172 = vmatpush.xpose.msra.mxu0 %v82
    %173 = vmatpush.xpose.msra.mxu0 %v79
    %174 = vmatpush.xpose.msra.mxu0 %v76
    %175 = vmatpush.xpose.msra.mxu0 %v73
    %176 = vmatpush.xpose.msra.mxu0 %v70
    %177 = vmatpush.xpose.msra.mxu0 %v67
    %178 = vmatmul.f32.gmra.mxu0 %v61
    %v179 = vpop.f32.mrf.mxu0
    %v180 = vadd.f32 0.0, %v179
    %181 = vmatmul.f32.gmra.mxu0 %v64
    %v182 = vpop.f32.mrf.mxu0
    %v183 = vadd.f32 0.0, %v182
    %184 = vdwg.mxu0
    %185 = vmatpush.xpose.msra.mxu0 %v160
    %186 = vmatpush.xpose.msra.mxu0 %v157
    %187 = vmatpush.xpose.msra.mxu0 %v154
    %188 = vmatpush.xpose.msra.mxu0 %v151
    %189 = vmatpush.xpose.msra.mxu0 %v148
    %190 = vmatpush.xpose.msra.mxu0 %v145
    %191 = vmatpush.xpose.msra.mxu0 %v142
    %192 = vmatpush.xpose.msra.mxu0 %v139
    %193 = vmatpush.xpose.msra.mxu0 %v136
    %194 = vmatpush.xpose.msra.mxu0 %v133
    %195 = vmatpush.xpose.msra.mxu0 %v130
    %196 = vmatpush.xpose.msra.mxu0 %v127
    %197 = vmatpush.xpose.msra.mxu0 %v124
    %198 = vmatpush.xpose.msra.mxu0 %v121
    %199 = vmatpush.xpose.msra.mxu0 %v118
    %200 = vmatpush.xpose.msra.mxu0 %v115
    %201 = vmatmul.f32.gmra.mxu0 %v61
    %v202 = vpop.f32.mrf.mxu0
    %v203 = vadd.f32 0.0, %v202
    %204 = vmatmul.f32.gmra.mxu0 %v64
    %v205 = vpop.f32.mrf.mxu0
    %v206 = vadd.f32 0.0, %v205
    %207 = vdwg.mxu0
    %v208 = vld [vmem:[%s2] sm:$0xff]
    %v209 = vld [vmem:[%s2 + $0x8] sm:$0xff]
    %v210 = vld [vmem:[%s2 + $0x10] sm:$0xff]
    %v211 = vld [vmem:[%s2 + $0x18] sm:$0xff]
    %v212 = vld [vmem:[%s2 + $0x20] sm:$0xff]
    %v213 = vld [vmem:[%s2 + $0x28] sm:$0xff]
    %v214 = vld [vmem:[%s2 + $0x30] sm:$0xff]
    %v215 = vld [vmem:[%s2 + $0x38] sm:$0xff]
    %v216 = vld [vmem:[%s2 + $0x40] sm:$0xff]
    %v217 = vld [vmem:[%s2 + $0x48] sm:$0xff]
    %v218 = vld [vmem:[%s2 + $0x50] sm:$0xff]
    %v219 = vld [vmem:[%s2 + $0x58] sm:$0xff]
    %v220 = vld [vmem:[%s2 + $0x60] sm:$0xff]
    %v221 = vld [vmem:[%s2 + $0x68] sm:$0xff]
    %v222 = vld [vmem:[%s2 + $0x70] sm:$0xff]
    %v223 = vld [vmem:[%s2 + $0x78] sm:$0xff]
    %v224 = vld [vmem:[%s2 + $0x80] sm:$0xff]
    %v225 = vld [vmem:[%s2 + $0x88] sm:$0xff]
    %v226 = vld [vmem:[%s2 + $0x90] sm:$0xff]
    %v227 = vld [vmem:[%s2 + $0x98] sm:$0xff]
    %v228 = vld [vmem:[%s2 + $0xa0] sm:$0xff]
    %v229 = vld [vmem:[%s2 + $0xa8] sm:$0xff]
    %v230 = vld [vmem:[%s2 + $0xb0] sm:$0xff]
    %v231 = vld [vmem:[%s2 + $0xb8] sm:$0xff]
    %v232 = vld [vmem:[%s2 + $0xc0] sm:$0xff]
    %v233 = vld [vmem:[%s2 + $0xc8] sm:$0xff]
    %v234 = vld [vmem:[%s2 + $0xd0] sm:$0xff]
    %v235 = vld [vmem:[%s2 + $0xd8] sm:$0xff]
    %v236 = vld [vmem:[%s2 + $0xe0] sm:$0xff]
    %v237 = vld [vmem:[%s2 + $0xe8] sm:$0xff]
    %v238 = vld [vmem:[%s2 + $0xf0] sm:$0xff]
    %v239 = vld [vmem:[%s2 + $0xf8] sm:$0xff]
    %v241 = vsel %vm59, %v208, 0
    %v244 = vsel %vm59, %v209, 0
    %v247 = vsel %vm59, %v210, 0
    %v250 = vsel %vm59, %v211, 0
    %v253 = vsel %vm59, %v212, 0
    %v256 = vsel %vm59, %v213, 0
    %v259 = vsel %vm59, %v214, 0
    %v262 = vsel %vm59, %v215, 0
    %v265 = vsel %vm59, %v216, 0
    %v268 = vsel %vm59, %v217, 0
    %v271 = vsel %vm59, %v218, 0
    %v274 = vsel %vm59, %v219, 0
    %v277 = vsel %vm59, %v220, 0
    %v280 = vsel %vm59, %v221, 0
    %v283 = vsel %vm59, %v222, 0
    %v286 = vsel %vm59, %v223, 0
    %v289 = vsel %vm59, %v224, 0
    %v292 = vsel %vm59, %v225, 0
    %v295 = vsel %vm59, %v226, 0
    %v298 = vsel %vm59, %v227, 0
    %v301 = vsel %vm59, %v228, 0
    %v304 = vsel %vm59, %v229, 0
    %v307 = vsel %vm59, %v230, 0
    %v310 = vsel %vm59, %v231, 0
    %v313 = vsel %vm59, %v232, 0
    %v316 = vsel %vm59, %v233, 0
    %v319 = vsel %vm59, %v234, 0
    %v322 = vsel %vm59, %v235, 0
    %v325 = vsel %vm59, %v236, 0
    %v328 = vsel %vm59, %v237, 0
    %v331 = vsel %vm59, %v238, 0
    %v334 = vsel %vm59, %v239, 0
    %336 = vmatpush.xpose.msra.mxu0 %v286
    %337 = vmatpush.xpose.msra.mxu0 %v283
    %338 = vmatpush.xpose.msra.mxu0 %v280
    %339 = vmatpush.xpose.msra.mxu0 %v277
    %340 = vmatpush.xpose.msra.mxu0 %v274
    %341 = vmatpush.xpose.msra.mxu0 %v271
    %342 = vmatpush.xpose.msra.mxu0 %v268
    %343 = vmatpush.xpose.msra.mxu0 %v265
    %344 = vmatpush.xpose.msra.mxu0 %v262
    %345 = vmatpush.xpose.msra.mxu0 %v259
    %346 = vmatpush.xpose.msra.mxu0 %v256
    %347 = vmatpush.xpose.msra.mxu0 %v253
    %348 = vmatpush.xpose.msra.mxu0 %v250
    %349 = vmatpush.xpose.msra.mxu0 %v247
    %350 = vmatpush.xpose.msra.mxu0 %v244
    %351 = vmatpush.xpose.msra.mxu0 %v241
    %352 = vmatmul.f32.gmra.mxu0 %v61
    %v353 = vpop.f32.mrf.mxu0
    %v354 = vadd.f32 0.0, %v353
    %355 = vmatmul.f32.gmra.mxu0 %v64
    %v356 = vpop.f32.mrf.mxu0
    %v357 = vadd.f32 0.0, %v356
    %358 = vdwg.mxu0
    %359 = vmatpush.xpose.msra.mxu0 %v334
    %360 = vmatpush.xpose.msra.mxu0 %v331
    %361 = vmatpush.xpose.msra.mxu0 %v328
    %362 = vmatpush.xpose.msra.mxu0 %v325
    %363 = vmatpush.xpose.msra.mxu0 %v322
    %364 = vmatpush.xpose.msra.mxu0 %v319
    %365 = vmatpush.xpose.msra.mxu0 %v316
    %366 = vmatpush.xpose.msra.mxu0 %v313
    %367 = vmatpush.xpose.msra.mxu0 %v310
    %368 = vmatpush.xpose.msra.mxu0 %v307
    %369 = vmatpush.xpose.msra.mxu0 %v304
    %370 = vmatpush.xpose.msra.mxu0 %v301
    %371 = vmatpush.xpose.msra.mxu0 %v298
    %372 = vmatpush.xpose.msra.mxu0 %v295
    %373 = vmatpush.xpose.msra.mxu0 %v292
    %374 = vmatpush.xpose.msra.mxu0 %v289
    %375 = vmatmul.f32.gmra.mxu0 %v61
    %v376 = vpop.f32.mrf.mxu0
    %v377 = vadd.f32 0.0, %v376
    %378 = vmatmul.f32.gmra.mxu0 %v64
    %v379 = vpop.f32.mrf.mxu0
    %v380 = vadd.f32 0.0, %v379
    %381 = vdwg.mxu0
    %v382 = vxor.u32 %v180, 2147483648
    %v383 = vxor.u32 %v203, 2147483648
    %v384 = vxor.u32 %v183, 2147483648
    %v385 = vxor.u32 %v206, 2147483648
    %v386 = vmul.f32 %v382, 1.442695
    %v387 = vpow.pop %v386
    %v388 = vmul.f32 %v383, 1.442695
    %v389 = vpow.pop %v388
    %v390 = vmul.f32 %v384, 1.442695
    %v391 = vpow.pop %v390
    %v392 = vmul.f32 %v385, 1.442695
    %v393 = vpow.pop %v392
    %v394 = vadd.f32 %v387, 1.0
    %v395 = vadd.f32 %v389, 1.0
    %v396 = vadd.f32 %v391, 1.0
    %v397 = vadd.f32 %v393, 1.0
    %v398 = vrcp.pop %v394
    %v399 = vmul.f32 %v394, %v398
    %v400 = vsub.f32 1.0, %v399
    %v401 = vmul.f32 %v398, %v400
    %v402 = vadd.f32 %v398, %v401
    %vm403 = vweird.f32 %v394
    %vm404 = vweird.f32 %v398
    %vm405 = vmor %vm403, %vm404
    %v406 = vsel %vm405, %v398, %v402
    %v407 = vand.u32 2147483647, %v394
    %vm408 = vcmp.eq.f32.partialorder %v407, 8.507059e+37
    %v409 = vand.u32 %v394, 2147483648
    %v410 = vor.u32 1.1754944e-38, %v409
    %v411 = vsel %vm408, %v410, %v406
    %v412 = vmul.f32 1.0, %v411
    %v413 = vrcp.pop %v395
    %v414 = vmul.f32 %v395, %v413
    %v415 = vsub.f32 1.0, %v414
    %v416 = vmul.f32 %v413, %v415
    %v417 = vadd.f32 %v413, %v416
    %vm418 = vweird.f32 %v395
    %vm419 = vweird.f32 %v413
    %vm420 = vmor %vm418, %vm419
    %v421 = vsel %vm420, %v413, %v417
    %v422 = vand.u32 2147483647, %v395
    %vm423 = vcmp.eq.f32.partialorder %v422, 8.507059e+37
    %v424 = vand.u32 %v395, 2147483648
    %v425 = vor.u32 1.1754944e-38, %v424
    %v426 = vsel %vm423, %v425, %v421
    %v427 = vmul.f32 1.0, %v426
    %v428 = vrcp.pop %v396
    %v429 = vmul.f32 %v396, %v428
    %v430 = vsub.f32 1.0, %v429
    %v431 = vmul.f32 %v428, %v430
    %v432 = vadd.f32 %v428, %v431
    %vm433 = vweird.f32 %v396
    %vm434 = vweird.f32 %v428
    %vm435 = vmor %vm433, %vm434
    %v436 = vsel %vm435, %v428, %v432
    %v437 = vand.u32 2147483647, %v396
    %vm438 = vcmp.eq.f32.partialorder %v437, 8.507059e+37
    %v439 = vand.u32 %v396, 2147483648
    %v440 = vor.u32 1.1754944e-38, %v439
    %v441 = vsel %vm438, %v440, %v436
    %v442 = vmul.f32 1.0, %v441
    %v443 = vrcp.pop %v397
    %v444 = vmul.f32 %v397, %v443
    %v445 = vsub.f32 1.0, %v444
    %v446 = vmul.f32 %v443, %v445
    %v447 = vadd.f32 %v443, %v446
    %vm448 = vweird.f32 %v397
    %vm449 = vweird.f32 %v443
    %vm450 = vmor %vm448, %vm449
    %v451 = vsel %vm450, %v443, %v447
    %v452 = vand.u32 2147483647, %v397
    %vm453 = vcmp.eq.f32.partialorder %v452, 8.507059e+37
    %v454 = vand.u32 %v397, 2147483648
    %v455 = vor.u32 1.1754944e-38, %v454
    %v456 = vsel %vm453, %v455, %v451
    %v457 = vmul.f32 1.0, %v456
    %v458 = vmul.f32 %v180, %v412
    %v459 = vmul.f32 %v203, %v427
    %v460 = vmul.f32 %v183, %v442
    %v461 = vmul.f32 %v206, %v457
    %v462 = vmul.f32 %v458, %v354
    %v463 = vmul.f32 %v459, %v377
    %v464 = vmul.f32 %v460, %v357
    %v465 = vmul.f32 %v461, %v380
    %v466 = vld [vmem:[#allocation2] sm:$0xff]
    %v467 = vld [vmem:[#allocation2 + $0x8] sm:$0xff]
    %v468 = vld [vmem:[%s3] sm:$0xff]
    %v469 = vld [vmem:[%s3 + $0x8] sm:$0xff]
    %v470 = vld [vmem:[%s3 + $0x10] sm:$0xff]
    %v471 = vld [vmem:[%s3 + $0x18] sm:$0xff]
    %v472 = vld [vmem:[%s3 + $0x20] sm:$0xff]
    %v473 = vld [vmem:[%s3 + $0x28] sm:$0xff]
    %v474 = vld [vmem:[%s3 + $0x30] sm:$0xff]
    %v475 = vld [vmem:[%s3 + $0x38] sm:$0xff]
    %v476 = vld [vmem:[%s3 + $0x40] sm:$0xff]
    %v477 = vld [vmem:[%s3 + $0x48] sm:$0xff]
    %v478 = vld [vmem:[%s3 + $0x50] sm:$0xff]
    %v479 = vld [vmem:[%s3 + $0x58] sm:$0xff]
    %v480 = vld [vmem:[%s3 + $0x60] sm:$0xff]
    %v481 = vld [vmem:[%s3 + $0x68] sm:$0xff]
    %v482 = vld [vmem:[%s3 + $0x70] sm:$0xff]
    %v483 = vld [vmem:[%s3 + $0x78] sm:$0xff]
    %484 = vmatpush.xpose.msra.mxu0 0.0
    %485 = vmatpush.xpose.msra.mxu0 0.0
    %486 = vmatpush.xpose.msra.mxu0 0.0
    %487 = vmatpush.xpose.msra.mxu0 0.0
    %488 = vmatpush.xpose.msra.mxu0 0.0
    %489 = vmatpush.xpose.msra.mxu0 0.0
    %490 = vmatpush.xpose.msra.mxu0 0.0
    %491 = vmatpush.xpose.msra.mxu0 0.0
    %492 = vmatpush.xpose.msra.mxu0 %v482
    %493 = vmatpush.xpose.msra.mxu0 %v480
    %494 = vmatpush.xpose.msra.mxu0 %v478
    %495 = vmatpush.xpose.msra.mxu0 %v476
    %496 = vmatpush.xpose.msra.mxu0 %v474
    %497 = vmatpush.xpose.msra.mxu0 %v472
    %498 = vmatpush.xpose.msra.mxu0 %v470
    %499 = vmatpush.xpose.msra.mxu0 %v468
    %500 = vmatmul.f32.gmra.mxu0 %v462
    %v501 = vpop.f32.mrf.mxu0
    %v502 = vadd.f32 0.0, %v501
    %503 = vmatmul.f32.gmra.mxu0 %v464
    %v504 = vpop.f32.mrf.mxu0
    %v505 = vadd.f32 0.0, %v504
    %506 = vdwg.mxu0
    %507 = vmatpush.xpose.msra.mxu0 0.0
    %508 = vmatpush.xpose.msra.mxu0 0.0
    %509 = vmatpush.xpose.msra.mxu0 0.0
    %510 = vmatpush.xpose.msra.mxu0 0.0
    %511 = vmatpush.xpose.msra.mxu0 0.0
    %512 = vmatpush.xpose.msra.mxu0 0.0
    %513 = vmatpush.xpose.msra.mxu0 0.0
    %514 = vmatpush.xpose.msra.mxu0 0.0
    %515 = vmatpush.xpose.msra.mxu0 %v483
    %516 = vmatpush.xpose.msra.mxu0 %v481
    %517 = vmatpush.xpose.msra.mxu0 %v479
    %518 = vmatpush.xpose.msra.mxu0 %v477
    %519 = vmatpush.xpose.msra.mxu0 %v475
    %520 = vmatpush.xpose.msra.mxu0 %v473
    %521 = vmatpush.xpose.msra.mxu0 %v471
    %522 = vmatpush.xpose.msra.mxu0 %v469
    %523 = vmatmul.f32.gmra.mxu0 %v463
    %v524 = vpop.f32.mrf.mxu0
    %v525 = vadd.f32 %v502, %v524
    %526 = vmatmul.f32.gmra.mxu0 %v465
    %v527 = vpop.f32.mrf.mxu0
    %v528 = vadd.f32 %v505, %v527
    %529 = vdwg.mxu0
    %v530 = vadd.f32 %v466, %v525
    %v531 = vadd.f32 %v467, %v528
    %532 = vst.msk [vmem:[#allocation2] sm:$0xff] %vm59, %v530
    %533 = vst.msk [vmem:[#allocation2 + $0x8] sm:$0xff] %vm59, %v531
    // Predicated region
    $region22: #{feed_forward_network.1} parent=1 // pred_check
      %p534 = pneg %p18
    $region23: #{feed_forward_network.1} parent=1 // pred_check_branch
      %536 = sbr.rel (%p534) target = $region25
    $region24: #{feed_forward_network.1} parent=1 // pred_region
      %v537 = vld [vmem:[#allocation2] sm:$0xff]
      %v538 = vld [vmem:[#allocation2 + $0x8] sm:$0xff]
      %539 = vst.msk [vmem:[#allocation3] sm:$0xff] %vm59, %v537
      %540 = vst.msk [vmem:[#allocation3 + $0x8] sm:$0xff] %vm59, %v538
    $region25: #{feed_forward_network.1} parent=1 // pred_fallthru
      _
    // Predicated region
    $region26: #{feed_forward_network.1} parent=1 // pred_check
      _
    $region27: #{feed_forward_network.1} parent=1 // pred_check_branch
      %542 = sbr.rel (0) target = $region29
    $region28: #{feed_forward_network.1} parent=1 // pred_region
      %544 = vsyncadd [#allocation4], 0
      %s545 = sshll.u32 [#allocation3], 4
      %s546 = int_to_ptr.vmem [resolvable:$true] %s545
      %s547 = sshll.u32 %s4, 4
      %s548 = int_to_ptr.hbm [resolvable:$true] %s547
      %553 = dma.vmem_to_hbm [thread:$0]  %s546, 256, %s548, [#allocation4], 128, 128, 8
    $region29: #{feed_forward_network.1} parent=1 // pred_fallthru
      _
    // Predicated region
    $region30: #{feed_forward_network.1} parent=1 // pred_check
      _
    $region31: #{feed_forward_network.1} parent=1 // pred_check_branch
      %555 = sbr.rel (0) target = $region33
    $region32: #{feed_forward_network.1} parent=1 // pred_region
      %557 = dma.done [#allocation4], 256
    $region33: #{feed_forward_network.1} parent=1 // pred_fallthru
      _
    %558 = vsyncpa [#allocation4], 1

</llo_original>
